<compile_context>
chip_gen: v6e
topology: v6e:2x2x1
jax: 0.10.0
libtpu: 0.0.40
codegen_flags: <defaults>
</compile_context>

<pallas_src>
import functools

import jax
import jax.numpy as jnp
from jax.experimental import pallas as pl
from jax.experimental.pallas import tpu as pltpu


def _round_up(v, m):
    return ((v + m - 1) // m) * m


def _focal_loss_kernel(x_ref, t_ref, o_ref, *, gamma, smooth, r_blk,
                       need_mask, full_rows, rem):
    """One (C, R, 128) logits tile -> one (8, 128) partial loss-sum tile."""
    x = x_ref[...].astype(jnp.float32)            # (C, R, 128) dense vregs
    t = t_ref[...].astype(jnp.int32)              # (R, 128) labels (widened)

    # Softmax pieces: reductions over the leading class axis are elementwise
    # maxes/adds across the C vreg groups (no cross-lane XLU work).
    m = jnp.max(x, axis=0)                        # (R, 128)
    e = jnp.exp(x - m[None])                      # (C, R, 128)  EUP, dense
    sum_e = jnp.sum(e, axis=0)                    # (R, 128)

    # Select e[target] without materializing a float one-hot.
    cls = jax.lax.broadcasted_iota(jnp.int32, e.shape, 0)
    e_t = jnp.sum(jnp.where(cls == t[None], e, 0.0), axis=0)     # (R, 128)
    if smooth:
        # sum(clamp(one_hot, s, 1-s) * e) == s*sum_e + (1-2s)*e_t
        sel = smooth * sum_e + (1.0 - 2.0 * smooth) * e_t
    else:
        sel = e_t

    pt = sel / sum_e + 1e-10
    # alpha[idx] == 1 in the reference forward -> numeric no-op.
    # gamma == 2 (int) lowers to a square, not exp/log.
    loss = -((1.0 - pt) ** gamma) * jnp.log(pt)   # (R, 128), dense

    def write(val):
        # (R,128) -> (R//8, 8, 128): leading-dim fold + VALU adds of R//8
        # vregs; the store stays one unmasked lane-dense (8,128) block.
        o_ref[...] = val.reshape(r_blk // 8, 8, 128).sum(axis=0)

    if need_mask:
        si = pl.program_id(1)
        last = pl.num_programs(1) - 1

        @pl.when(si != last)
        def _():
            write(loss)

        @pl.when(si == last)        # only the last spatial tile can be ragged
        def _():
            grow = si * r_blk + jax.lax.broadcasted_iota(
                jnp.int32, loss.shape, 0)
            lane = jax.lax.broadcasted_iota(jnp.int32, loss.shape, 1)
            valid = (grow < full_rows) | ((grow == full_rows) & (lane < rem))
            write(jnp.where(valid, loss, 0.0))
    else:
        write(loss)


def focal_loss_many_classification(x, target, *, num_class, gamma=2,
                                   smooth=None, target_block_bytes=4 << 20):
    """Scalar focal loss matching FocalLossManyClassification.forward."""
    if x.ndim > 2:
        b, c = int(x.shape[0]), int(x.shape[1])
        s = 1
        for d in x.shape[2:]:
            s *= int(d)
        x3 = x.reshape(b, c, s)                 # free contiguous merge (NCHW)
        tflat = target.reshape(b, s)
    else:
        # (N, C) rows: one HBM transpose so classes sit on the grouped axis.
        # TODO(synk): dedicated classes-on-lanes kernel to avoid this copy.
        b, c, s = 1, int(x.shape[1]), int(x.shape[0])
        x3 = x.T.reshape(1, c, s)
        tflat = target.reshape(1, s)
    assert c == num_class

    # Narrow label dtype (cuts the target stream's HBM bytes, biggest win on
    # v5e); the row-tile alignment follows the dtype's native sublane packing.
    if num_class <= 127:
        tdt, align = jnp.int8, 32
    elif num_class <= 32767:
        tdt, align = jnp.int16, 16
    else:
        tdt, align = jnp.int32, 8
    if c * align * 128 * 4 > 4 * target_block_bytes:
        tdt, align = jnp.int32, 8           # huge C: favour the smallest R

    lane = 128
    itemsize = jnp.dtype(x.dtype).itemsize
    sr_need = pl.cdiv(s, lane)              # spatial rows carrying real data

    # Row cap so one x block is ~target_block_bytes of HBM per grid step.
    r_cap = max(align,
                (target_block_bytes // (c * lane * itemsize) // align) * align)
    n_s = pl.cdiv(sr_need, r_cap)
    if b * n_s < 2:
        n_s = 2                             # keep both v7x TensorCores busy
    r_blk = _round_up(pl.cdiv(sr_need, n_s), align)   # balanced tile rows
    n_s = pl.cdiv(sr_need, r_blk)           # all padding lands in last tile
    sr = n_s * r_blk
    s_pad = sr * lane
    need_mask = s_pad != s

    tflat = tflat.astype(tdt)
    if need_mask:
        # Defined padding (x=0, t=-1): no stale-VMEM garbage through exp/log;
        # the padded columns are zeroed by the in-kernel positional mask.
        x3 = jnp.pad(x3, ((0, 0), (0, 0), (0, s_pad - s)))
        tflat = jnp.pad(tflat, ((0, 0), (0, s_pad - s)), constant_values=-1)
    x4 = x3.reshape(b, c, sr, lane)
    t4 = tflat.reshape(b, sr, lane)

    kernel = functools.partial(
        _focal_loss_kernel, gamma=gamma, smooth=smooth, r_blk=r_blk,
        need_mask=need_mask, full_rows=s // lane, rem=s % lane)

    # VMEM budget: double-buffered x & t blocks + f32 temporaries (e, the
    # where-select, narrow (R,128) strips).  Cap below v7x's 64 MiB physical.
    xb = c * r_blk * lane * itemsize
    tb = r_blk * lane * jnp.dtype(tdt).itemsize
    f32b = c * r_blk * lane * 4
    vmem_need = 2 * xb + 2 * tb + 3 * f32b + 8 * r_blk * lane * 4 + (2 << 20)
    vmem_limit = int(min(max(vmem_need, 32 << 20), 60 << 20))

    partials = pl.pallas_call(
        kernel,
        out_shape=jax.ShapeDtypeStruct((b * n_s, 8, 128), jnp.float32),
        grid_spec=pltpu.PrefetchScalarGridSpec(
            num_scalar_prefetch=0,
            grid=(b, n_s),
            in_specs=[
                pl.BlockSpec((None, c, r_blk, lane),
                             lambda bi, si: (bi, 0, si, 0)),
                pl.BlockSpec((None, r_blk, lane),
                             lambda bi, si: (bi, si, 0)),
            ],
            out_specs=pl.BlockSpec((None, 8, 128),
                                   lambda bi, si: (bi * n_s + si, 0, 0)),
        ),
        compiler_params=pltpu.CompilerParams(
            dimension_semantics=("parallel", "parallel"),
            vmem_limit_bytes=vmem_limit),
    )(x4, t4)

    # Mean over the B*H*W rows (== torch loss.mean(); alpha == 1, see note).
    return jnp.sum(partials) / (b * s)


def _reference(x, target, *, gamma=2, smooth=None):
    c = x.shape[1]
    logit = jax.nn.softmax(x, axis=1)
    if x.ndim > 2:
        logit = jnp.moveaxis(logit.reshape(x.shape[0], c, -1), 1, -1)
        logit = logit.reshape(-1, c)
    t = target.reshape(-1).astype(jnp.int32)
    one_hot = jax.nn.one_hot(t, c, dtype=jnp.float32)
    if smooth:
        one_hot = jnp.clip(one_hot, smooth, 1.0 - smooth)
    pt = jnp.sum(one_hot * logit, axis=1) + 1e-10
    loss = -((1.0 - pt) ** gamma) * jnp.log(pt)
    return jnp.mean(loss)


if __name__ == "__main__":
    key = jax.random.PRNGKey(0)
    k_x, k_t, k_x2, k_t2 = jax.random.split(key, 4)

    # Primary shape from the module's intended NCHW segmentation use.
    B, C, H, W = 2, 4, 16, 16
    x = jax.random.normal(k_x, (B, C, H, W), dtype=jnp.float32)
    target = jax.random.randint(k_t, (B, H, W), 0, C, dtype=jnp.int32)

    out = focal_loss_many_classification(x, target, num_class=C, gamma=2)
    out = jax.block_until_ready(out)
    ref = _reference(x, target, gamma=2)
    assert jnp.allclose(out, ref, rtol=1e-5, atol=1e-6), (out, ref)

    # Ragged spatial tail + label smoothing (exercises padding + tail mask).
    B2, C2, H2, W2 = 1, 4, 3, 50        # S = 150, not a multiple of 128
    x2 = jax.random.normal(k_x2, (B2, C2, H2, W2), dtype=jnp.float32)
    t2 = jax.random.randint(k_t2, (B2, H2, W2), 0, C2, dtype=jnp.int32)
    out2 = focal_loss_many_classification(x2, t2, num_class=C2, gamma=2,
                                          smooth=0.1)
    out2 = jax.block_until_ready(out2)
    ref2 = _reference(x2, t2, gamma=2, smooth=0.1)
    assert jnp.allclose(out2, ref2, rtol=1e-5, atol=1e-6), (out2, ref2)

    print("KERNEL_OK")
</pallas_src>

<mosaic_0001>
module attributes {stable_mosaic.version = 11 : i64} {
  func.func @_focal_loss_kernel(%arg0: i32, %arg1: i32, %arg2: memref<1x4x32x128xf32, #tpu.memory_space<vmem>>, %arg3: memref<1x32x128xi8, #tpu.memory_space<vmem>>, %arg4: memref<1x8x128xf32, #tpu.memory_space<vmem>>) attributes {dimension_semantics = [#tpu.dimension_semantics<parallel>, #tpu.dimension_semantics<parallel>], iteration_bounds = array<i64: 2, 1>, scalar_prefetch = 0 : i64, scratch_operands = 0 : i64, tpu.core_type = #tpu.core_type<tc>, window_params = [{transform_indices = @transform_0, window_bounds = array<i64: 1, 4, 32, 128>}, {transform_indices = @transform_1, window_bounds = array<i64: 1, 32, 128>}, {transform_indices = @transform_2, window_bounds = array<i64: 1, 8, 128>}]} {
    %c0 = arith.constant 0 : index
    %c0_0 = arith.constant 0 : index
    %c0_1 = arith.constant 0 : index
    %c0_2 = arith.constant 0 : index
    %0 = vector.load %arg2[%c0, %c0_0, %c0_1, %c0_2] : memref<1x4x32x128xf32, #tpu.memory_space<vmem>>, vector<1x4x32x128xf32>
    %1 = vector.shape_cast %0 : vector<1x4x32x128xf32> to vector<4x32x128xf32>
    %c0_3 = arith.constant 0 : index
    %c0_4 = arith.constant 0 : index
    %c0_5 = arith.constant 0 : index
    %2 = vector.load %arg3[%c0_3, %c0_4, %c0_5] : memref<1x32x128xi8, #tpu.memory_space<vmem>>, vector<1x32x128xi8>
    %3 = vector.shape_cast %2 : vector<1x32x128xi8> to vector<32x128xi8>
    %4 = arith.extsi %3 : vector<32x128xi8> to vector<32x128xi32>
    %cst = arith.constant dense<0xFF800000> : vector<32x128xf32>
    %5 = vector.multi_reduction <maximumf>, %1, %cst [0] : vector<4x32x128xf32> to vector<32x128xf32>
    %6 = vector.shape_cast %5 : vector<32x128xf32> to vector<1x32x128xf32>
    %7 = vector.broadcast %6 : vector<1x32x128xf32> to vector<4x32x128xf32>
    %8 = arith.subf %1, %7 : vector<4x32x128xf32>
    %9 = math.exp %8 : vector<4x32x128xf32>
    %cst_6 = arith.constant dense<0.000000e+00> : vector<32x128xf32>
    %10 = vector.multi_reduction <add>, %9, %cst_6 [0] : vector<4x32x128xf32> to vector<32x128xf32>
    %11 = tpu.iota {dimensions = array<i32: 0>} : vector<4x32x128xi32>
    %12 = vector.shape_cast %4 : vector<32x128xi32> to vector<1x32x128xi32>
    %13 = vector.broadcast %12 : vector<1x32x128xi32> to vector<4x32x128xi32>
    %14 = arith.cmpi eq, %11, %13 : vector<4x32x128xi32>
    %cst_7 = arith.constant 0.000000e+00 : f32
    %15 = vector.broadcast %cst_7 : f32 to vector<4x32x128xf32>
    %16 = arith.select %14, %9, %15 : vector<4x32x128xi1>, vector<4x32x128xf32>
    %cst_8 = arith.constant dense<0.000000e+00> : vector<32x128xf32>
    %17 = vector.multi_reduction <add>, %16, %cst_8 [0] : vector<4x32x128xf32> to vector<32x128xf32>
    %18 = arith.divf %17, %10 : vector<32x128xf32>
    %cst_9 = arith.constant 1.000000e-10 : f32
    %19 = vector.broadcast %cst_9 : f32 to vector<32x128xf32>
    %20 = arith.addf %18, %19 : vector<32x128xf32>
    %cst_10 = arith.constant 1.000000e+00 : f32
    %21 = vector.broadcast %cst_10 : f32 to vector<32x128xf32>
    %22 = arith.subf %21, %20 : vector<32x128xf32>
    %23 = arith.mulf %22, %22 : vector<32x128xf32>
    %cst_11 = arith.constant 0.000000e+00 : f32
    %24 = vector.broadcast %cst_11 : f32 to vector<32x128xf32>
    %25 = arith.subf %24, %23 : vector<32x128xf32>
    %26 = math.log %20 : vector<32x128xf32>
    %27 = arith.mulf %25, %26 : vector<32x128xf32>
    %c0_i32 = arith.constant 0 : i32
    %28 = arith.cmpi ne, %arg1, %c0_i32 : i32
    %29 = arith.extui %28 : i1 to i32
    %c0_i32_12 = arith.constant 0 : i32
    %30 = arith.cmpi ne, %29, %c0_i32_12 : i32
    scf.if %30 {
      %34 = vector.shape_cast %27 : vector<32x128xf32> to vector<4x8x128xf32>
      %cst_15 = arith.constant dense<0.000000e+00> : vector<8x128xf32>
      %35 = vector.multi_reduction <add>, %34, %cst_15 [0] : vector<4x8x128xf32> to vector<8x128xf32>
      %c0_16 = arith.constant 0 : index
      %c0_17 = arith.constant 0 : index
      %c0_18 = arith.constant 0 : index
      %36 = vector.load %arg4[%c0_16, %c0_17, %c0_18] : memref<1x8x128xf32, #tpu.memory_space<vmem>>, vector<1x8x128xf32>
      %37 = vector.shape_cast %36 : vector<1x8x128xf32> to vector<8x128xf32>
      %38 = vector.shape_cast %35 : vector<8x128xf32> to vector<1x8x128xf32>
      tpu.vector_store %arg4[%c0_16, %c0_17, %c0_18], %38 {strides = array<i32>} : memref<1x8x128xf32, #tpu.memory_space<vmem>>, vector<1x8x128xf32>,
    } else {
    }
    %c0_i32_13 = arith.constant 0 : i32
    %31 = arith.cmpi eq, %arg1, %c0_i32_13 : i32
    %32 = arith.extui %31 : i1 to i32
    %c0_i32_14 = arith.constant 0 : i32
    %33 = arith.cmpi ne, %32, %c0_i32_14 : i32
    scf.if %33 {
      %c32_i32 = arith.constant 32 : i32
      %34 = arith.muli %arg1, %c32_i32 : i32
      %35 = tpu.iota {dimensions = array<i32: 0>} : vector<32x128xi32>
      %36 = vector.broadcast %34 : i32 to vector<32x128xi32>
      %37 = arith.addi %36, %35 : vector<32x128xi32>
      %38 = tpu.iota {dimensions = array<i32: 1>} : vector<32x128xi32>
      %c2_i32 = arith.constant 2 : i32
      %39 = vector.broadcast %c2_i32 : i32 to vector<32x128xi32>
      %40 = arith.cmpi slt, %37, %39 : vector<32x128xi32>
      %c2_i32_15 = arith.constant 2 : i32
      %41 = vector.broadcast %c2_i32_15 : i32 to vector<32x128xi32>
      %42 = arith.cmpi eq, %37, %41 : vector<32x128xi32>
      %c0_i32_16 = arith.constant 0 : i32
      %43 = vector.broadcast %c0_i32_16 : i32 to vector<32x128xi32>
      %44 = arith.cmpi slt, %38, %43 : vector<32x128xi32>
      %45 = arith.andi %42, %44 : vector<32x128xi1>
      %46 = arith.ori %40, %45 : vector<32x128xi1>
      %cst_17 = arith.constant 0.000000e+00 : f32
      %47 = vector.broadcast %cst_17 : f32 to vector<32x128xf32>
      %48 = arith.select %46, %27, %47 : vector<32x128xi1>, vector<32x128xf32>
      %49 = vector.shape_cast %48 : vector<32x128xf32> to vector<4x8x128xf32>
      %cst_18 = arith.constant dense<0.000000e+00> : vector<8x128xf32>
      %50 = vector.multi_reduction <add>, %49, %cst_18 [0] : vector<4x8x128xf32> to vector<8x128xf32>
      %c0_19 = arith.constant 0 : index
      %c0_20 = arith.constant 0 : index
      %c0_21 = arith.constant 0 : index
      %51 = vector.load %arg4[%c0_19, %c0_20, %c0_21] : memref<1x8x128xf32, #tpu.memory_space<vmem>>, vector<1x8x128xf32>
      %52 = vector.shape_cast %51 : vector<1x8x128xf32> to vector<8x128xf32>
      %53 = vector.shape_cast %50 : vector<8x128xf32> to vector<1x8x128xf32>
      tpu.vector_store %arg4[%c0_19, %c0_20, %c0_21], %53 {strides = array<i32>} : memref<1x8x128xf32, #tpu.memory_space<vmem>>, vector<1x8x128xf32>,
    } else {
    }
    return
  }
  func.func @transform_0(%arg0: i32, %arg1: i32) -> (i32, i32, i32, i32) {
    %c0_i32 = arith.constant 0 : i32
    %c0_i32_0 = arith.constant 0 : i32
    %c0_i32_1 = arith.constant 0 : i32
    return %arg0, %c0_i32, %arg1, %c0_i32_0 : i32, i32, i32, i32
  }
  func.func @transform_1(%arg0: i32, %arg1: i32) -> (i32, i32, i32) {
    %c0_i32 = arith.constant 0 : i32
    %c0_i32_0 = arith.constant 0 : i32
    return %arg0, %arg1, %c0_i32 : i32, i32, i32
  }
  func.func @transform_2(%arg0: i32, %arg1: i32) -> (i32, i32, i32) {
    %c1_i32 = arith.constant 1 : i32
    %0 = arith.muli %arg0, %c1_i32 : i32
    %1 = arith.addi %0, %arg1 : i32
    %c0_i32 = arith.constant 0 : i32
    %c0_i32_0 = arith.constant 0 : i32
    %c0_i32_1 = arith.constant 0 : i32
    return %1, %c0_i32, %c0_i32_0 : i32, i32, i32
  }
}

</mosaic_0001>

<llo_original>
// kernel: tpu_custom_call.1
$region0: #{tpu_custom_call.1}
  #allocation0 [shape = 'u32[]', space=smem, size = 0x4, offset = 0x4, fixed_abs, tag = 'smem constant byte address 0x4 - core index']
  #allocation1 [shape = 'u32[144,128]{1,0:T(1,128)}', space=vmem, size = 0x12000, scoped, tag = 'internal scratch']
  %s0 = inlined_call_operand.hbm [shape: f32[2,4,32,128], index: 0, kind: input, shape index: {}]
  %s1 = inlined_call_operand.hbm [shape: s8[2,32,128], index: 1, kind: input, shape index: {}]
  %s2 = inlined_call_operand.hbm [shape: f32[2,8,128], index: 2, kind: output, shape index: {}]
  %s3 = sld [smem:[#allocation0]]
  $region57: #{tpu_custom_call.1} parent=0
    _
  %s5 = ssub.s32 1, %s3
  %s6 = scalar_select 0, %s5, %s3
  $region1: #{tpu_custom_call.1} parent=0
    #allocation2 [shape = 'u8[131072]{0}', space=vmem, size = 0x20000, scoped, tag = 'input window, operand 0']
    #allocation3 [shape = 's32[2]{0}', space=sflag, size = 0x8, scoped, tag = 'scoped memory for tpu_custom_call.1']
    #allocation4 [shape = 's32[2]{0}', space=sflag, size = 0x8, scoped, tag = 'scoped memory for tpu_custom_call.1']
    #allocation5 [shape = 'u8[8192]{0}', space=vmem, size = 0x2000, scoped, tag = 'input window, operand 1']
    #allocation6 [shape = 's32[2]{0}', space=sflag, size = 0x8, scoped, tag = 'scoped memory for tpu_custom_call.1']
    #allocation7 [shape = 'u8[8192]{0}', space=vmem, size = 0x2000, scoped, tag = 'output window, operand 0']
    %7 = vsyncpa [#allocation3], 0
    %s8 = scalar_lea.sflag [#allocation3], 1
    %9 = vsyncpa %s8, 0
    %10 = vsyncpa [#allocation6], 0
    %s11 = scalar_lea.sflag [#allocation6], 1
    %12 = vsyncpa %s11, 0
    %13 = vsyncpa [#allocation4], 0
    %s14 = scalar_lea.sflag [#allocation4], 1
    %15 = vsyncpa %s14, 0
    loop: start=0, step=1, limit=4
    $region2: #{tpu_custom_call.1} parent=1 // loop_pre_header
      _
    $region3: #{tpu_custom_call.1} parent=1 // loop_header
      %s17 = sphi 0, %s21
      %p18 = scmp.ge.s32.totalorder %s17, 4
      %s24 = sphi 0, %s36
      %s25 = sphi 0, %s32
      %s26 = sphi 0, %s24
      %s27 = sphi 0, %s25
      %s28 = sphi 0, %s26
      %s29 = sphi 0, %s27
      %s41 = sphi 0, %s43
      %s44 = sphi 0, %s41
      %s45 = sphi 0, %s44
      %s61 = sphi 0, %s45
      %s69 = sphi 0, %s71
      %s72 = sphi 0, %s69
      %s73 = sphi 0, %s72
      %s89 = sphi 0, %s73
      %s97 = sphi 0, %s99
      %s100 = sphi 0, %s97
      %s101 = sphi 0, %s100
      %s117 = sphi 0, %s101
    $region4: #{tpu_custom_call.1} parent=1 // loop_header_branch
      %20 = sbr.rel (%p18) target = $region8
    $region5: #{tpu_custom_call.1} parent=1 // loop_body
      %s22 = ssub.s32 %s17, 1
      %s23 = ssub.s32 %s17, 2
      %s30 = sadd.s32 1, %s25
      %p31 = scmp.ge.s32.totalorder %s30, 1
      %s32 = scalar_select %p31, 0, %s30
      %s33 = sadd.s32 1, %s24
      %s34 = scalar_select %p31, %s33, %s24
      %p35 = scmp.ge.s32.totalorder %s34, 2
      %s36 = scalar_select %p35, 0, %s34
      %s37 = ssub.s32 %s24, %s36
      %s38 = ssub.s32 %s25, %s32
      %s39 = sor.u32 %s37, %s38
      %p40 = scmp.eq.s32.totalorder %s39, 0
      %s42 = sadd.s32 %s41, 1
      %s43 = scalar_select %p40, %s41, %s42
      %p46 = pneg %p40
      %p47 = scmp.eq.s32.totalorder %s17, 1
      %p48 = por %p46, %p47
      %p49 = scmp.ne.s32.totalorder %s41, %s44
      %p50 = scmp.eq.s32.totalorder %s17, 0
      %p51 = por %p49, %p50
      %p52 = scmp.ne.s32.totalorder %s41, %s44
      %p53 = scmp.eq.s32.totalorder %s22, 1
      %p54 = por %p52, %p53
      %p55 = scmp.ne.s32.totalorder %s44, %s45
      %p56 = scmp.eq.s32.totalorder %s22, 0
      %p57 = por %p55, %p56
      %p58 = scmp.ne.s32.totalorder %s44, %s45
      %p59 = scmp.eq.s32.totalorder %s23, 1
      %p60 = por %p58, %p59
      %p62 = scmp.ne.s32.totalorder %s45, %s61
      %p63 = scmp.eq.s32.totalorder %s23, 0
      %p64 = por %p62, %p63
      %s65 = ssub.s32 %s24, %s36
      %s66 = ssub.s32 %s25, %s32
      %s67 = sor.u32 %s65, %s66
      %p68 = scmp.eq.s32.totalorder %s67, 0
      %s70 = sadd.s32 %s69, 1
      %s71 = scalar_select %p68, %s69, %s70
      %p74 = pneg %p68
      %p75 = scmp.eq.s32.totalorder %s17, 1
      %p76 = por %p74, %p75
      %p77 = scmp.ne.s32.totalorder %s69, %s72
      %p78 = scmp.eq.s32.totalorder %s17, 0
      %p79 = por %p77, %p78
      %p80 = scmp.ne.s32.totalorder %s69, %s72
      %p81 = scmp.eq.s32.totalorder %s22, 1
      %p82 = por %p80, %p81
      %p83 = scmp.ne.s32.totalorder %s72, %s73
      %p84 = scmp.eq.s32.totalorder %s22, 0
      %p85 = por %p83, %p84
      %p86 = scmp.ne.s32.totalorder %s72, %s73
      %p87 = scmp.eq.s32.totalorder %s23, 1
      %p88 = por %p86, %p87
      %p90 = scmp.ne.s32.totalorder %s73, %s89
      %p91 = scmp.eq.s32.totalorder %s23, 0
      %p92 = por %p90, %p91
      %s93 = sadd.s32 %s24, %s25
      %s94 = sadd.s32 %s36, %s32
      %s95 = ssub.s32 %s93, %s94
      %p96 = scmp.eq.s32.totalorder %s95, 0
      %s98 = sadd.s32 %s97, 1
      %s99 = scalar_select %p96, %s97, %s98
      %p102 = pneg %p96
      %p103 = scmp.eq.s32.totalorder %s17, 1
      %p104 = por %p102, %p103
      %p105 = scmp.ne.s32.totalorder %s97, %s100
      %p106 = scmp.eq.s32.totalorder %s17, 0
      %p107 = por %p105, %p106
      %p108 = scmp.ne.s32.totalorder %s97, %s100
      %p109 = scmp.eq.s32.totalorder %s22, 1
      %p110 = por %p108, %p109
      %p111 = scmp.ne.s32.totalorder %s100, %s101
      %p112 = scmp.eq.s32.totalorder %s22, 0
      %p113 = por %p111, %p112
      %p114 = scmp.ne.s32.totalorder %s100, %s101
      %p115 = scmp.eq.s32.totalorder %s23, 1
      %p116 = por %p114, %p115
      %p118 = scmp.ne.s32.totalorder %s101, %s117
      %p119 = scmp.eq.s32.totalorder %s23, 0
      %p120 = por %p118, %p119
      %p121 = scmp.le.s32.totalorder 1, %s17
      %p122 = scmp.lt.s32.totalorder %s17, 3
      %p123 = pnand %p121, %p122
      %p124 = pneg %p123
      // Predicated region
      $region9: #{tpu_custom_call.1} parent=5 // pred_check
        _
      $region10: #{tpu_custom_call.1} parent=5 // pred_check_branch
        %126 = sbr.rel (%p123) target = $region12
      $region11: #{tpu_custom_call.1} parent=5 // pred_region
        %s127 = ssub.s32 %s17, 1
      $region12: #{tpu_custom_call.1} parent=5 // pred_fallthru
        _
      %p128 = scmp.lt.s32.totalorder %s17, 2
      // Predicated region
      $region13: #{tpu_custom_call.1} parent=5 // pred_check
        %p129 = pneg %p128
      $region14: #{tpu_custom_call.1} parent=5 // pred_check_branch
        %131 = sbr.rel (%p129) target = $region16
      $region15: #{tpu_custom_call.1} parent=5 // pred_region
        // Predicated region
        $region17: #{tpu_custom_call.1} parent=15 // pred_check
          %p132 = pneg %p51
        $region18: #{tpu_custom_call.1} parent=15 // pred_check_branch
          %134 = sbr.rel (%p132) target = $region20
        $region19: #{tpu_custom_call.1} parent=15 // pred_region
          %s135 = sand.u32 %s41, 1
          %s136 = scalar_lea.sflag [#allocation3], %s135
          %s137 = sand.u32 %s41, 1
          %s138 = smul.addr %s137, 128
          %s139 = scalar_lea.vmem [#allocation2], %s138
          %s140 = smul.u32 4, %s25
          %s142 = ssub.s32 2048, 2048
          %143 = vsyncadd %s136, %s142
          %s144 = smul.addr %s24, 16
          %s145 = sadd.s32 %s140, %s144
          %s146 = smul.addr %s145, 128
          %s147 = scalar_lea.hbm %s0, %s146
          %s148 = sshll.u32 %s139, 4
          %s149 = int_to_ptr.vmem [resolvable:$true] %s148
          %154 = dma.hbm_to_vmem [thread:$0]  %s147, 2048, %s149, %s136, 128, 128, 8
        $region20: #{tpu_custom_call.1} parent=15 // pred_fallthru
          _
        // Predicated region
        $region21: #{tpu_custom_call.1} parent=15 // pred_check
          %p155 = pneg %p79
        $region22: #{tpu_custom_call.1} parent=15 // pred_check_branch
          %157 = sbr.rel (%p155) target = $region24
        $region23: #{tpu_custom_call.1} parent=15 // pred_region
          %s158 = sand.u32 %s69, 1
          %s159 = scalar_lea.sflag [#allocation6], %s158
          %s160 = sand.u32 %s69, 1
          %s161 = smul.addr %s160, 8
          %s162 = scalar_lea.vmem [#allocation5], %s161
          %s164 = ssub.s32 128, 128
          %165 = vsyncadd %s159, %s164
          %s166 = sadd.s32 %s25, %s24
          %s167 = smul.addr %s166, 128
          %s168 = scalar_lea.hbm %s1, %s167
          %s170 = sshll.u32 %s162, 4
          %s171 = int_to_ptr.vmem [resolvable:$true] %s170
          %173 = dma.hbm_to_vmem [thread:$0]  %s168, 128, %s171, %s159
        $region24: #{tpu_custom_call.1} parent=15 // pred_fallthru
          _
      $region16: #{tpu_custom_call.1} parent=5 // pred_fallthru
        _
      %p174 = scmp.le.s32.totalorder 1, %s17
      %p175 = scmp.lt.s32.totalorder %s17, 3
      %p176 = pnand %p174, %p175
      %p177 = pneg %p176
      // Predicated region
      $region25: #{tpu_custom_call.1} parent=5 // pred_check
        _
      $region26: #{tpu_custom_call.1} parent=5 // pred_check_branch
        %179 = sbr.rel (%p176) target = $region28
      $region27: #{tpu_custom_call.1} parent=5 // pred_region
        %s180 = ssub.s32 %s17, 1
        %s181 = sand.u32 %s44, 1
        %s182 = scalar_lea.sflag [#allocation3], %s181
        %s183 = sand.u32 %s44, 1
        %s184 = smul.addr %s183, 128
        %s185 = scalar_lea.vmem [#allocation2], %s184
        // Predicated region
        $region29: #{tpu_custom_call.1} parent=27 // pred_check
          %p186 = pneg %p57
        $region30: #{tpu_custom_call.1} parent=27 // pred_check_branch
          %188 = sbr.rel (%p186) target = $region32
        $region31: #{tpu_custom_call.1} parent=27 // pred_region
          %189 = dma.done %s182, 2048
        $region32: #{tpu_custom_call.1} parent=27 // pred_fallthru
          _
        %s190 = sand.u32 %s72, 1
        %s191 = scalar_lea.sflag [#allocation6], %s190
        %s192 = sand.u32 %s72, 1
        %s193 = smul.addr %s192, 8
        %s194 = scalar_lea.vmem [#allocation5], %s193
        // Predicated region
        $region33: #{tpu_custom_call.1} parent=27 // pred_check
          %p195 = pneg %p85
        $region34: #{tpu_custom_call.1} parent=27 // pred_check_branch
          %197 = sbr.rel (%p195) target = $region36
        $region35: #{tpu_custom_call.1} parent=27 // pred_region
          %198 = dma.done %s191, 128
        $region36: #{tpu_custom_call.1} parent=27 // pred_fallthru
          _
        %s199 = sand.u32 %s44, 1
        %s200 = scalar_lea.sflag [#allocation3], %s199
        %s201 = sand.u32 %s44, 1
        %s202 = smul.addr %s201, 128
        %s203 = scalar_lea.vmem [#allocation2], %s202
        %p204 = pneg %p57
        %p205 = pneg %p54
        %s206 = sand.u32 %s72, 1
        %s207 = scalar_lea.sflag [#allocation6], %s206
        %s208 = sand.u32 %s72, 1
        %s209 = smul.addr %s208, 8
        %s210 = scalar_lea.vmem [#allocation5], %s209
        %p211 = pneg %p85
        %p212 = pneg %p82
        %p213 = pneg %p113
        %p214 = pneg %p110
        %s215 = sand.u32 %s100, 1
        %s216 = scalar_lea.sflag [#allocation4], %s215
        %s217 = sand.u32 %s100, 1
        %s218 = smul.addr %s217, 8
        %s219 = scalar_lea.vmem [#allocation7], %s218
        %s220 = smul.u32 4, %s27
        %s221 = sadd.s32 %s26, %s27
        %v222 = vld [vmem:[%s185] sm:$0xff]
        %v223 = vld [vmem:[%s185 + $0x8] sm:$0xff]
        %v224 = vld [vmem:[%s185 + $0x10] sm:$0xff]
        %v225 = vld [vmem:[%s185 + $0x18] sm:$0xff]
        %v226 = vld [vmem:[%s185 + $0x20] sm:$0xff]
        %v227 = vld [vmem:[%s185 + $0x28] sm:$0xff]
        %v228 = vld [vmem:[%s185 + $0x30] sm:$0xff]
        %v229 = vld [vmem:[%s185 + $0x38] sm:$0xff]
        %v230 = vld [vmem:[%s185 + $0x40] sm:$0xff]
        %v231 = vld [vmem:[%s185 + $0x48] sm:$0xff]
        %v232 = vld [vmem:[%s185 + $0x50] sm:$0xff]
        %v233 = vld [vmem:[%s185 + $0x58] sm:$0xff]
        %v234 = vld [vmem:[%s185 + $0x60] sm:$0xff]
        %v235 = vld [vmem:[%s185 + $0x68] sm:$0xff]
        %v236 = vld [vmem:[%s185 + $0x70] sm:$0xff]
        %v237 = vld [vmem:[%s185 + $0x78] sm:$0xff]
        %v238 = vld [vmem:[%s194] sm:$0xff]
        %v239 = vunpack.c.0.s8 %v238
        %v240 = vunpack.c.1.s8 %v238
        %v241 = vunpack.c.2.s8 %v238
        %v242 = vunpack.c.3.s8 %v238
        %v243 = vmax.f32 %v222, %v226
        %v244 = vmax.f32 %v243, %v230
        %v245 = vmax.f32 %v244, %v234
        %v246 = vmax.f32 %v223, %v227
        %v247 = vmax.f32 %v246, %v231
        %v248 = vmax.f32 %v247, %v235
        %v249 = vmax.f32 %v224, %v228
        %v250 = vmax.f32 %v249, %v232
        %v251 = vmax.f32 %v250, %v236
        %v252 = vmax.f32 %v225, %v229
        %v253 = vmax.f32 %v252, %v233
        %v254 = vmax.f32 %v253, %v237
        %v255 = vsub.f32 %v222, %v245
        %v256 = vsub.f32 %v223, %v248
        %v257 = vsub.f32 %v224, %v251
        %v258 = vsub.f32 %v225, %v254
        %v259 = vsub.f32 %v226, %v245
        %v260 = vsub.f32 %v227, %v248
        %v261 = vsub.f32 %v228, %v251
        %v262 = vsub.f32 %v229, %v254
        %v263 = vsub.f32 %v230, %v245
        %v264 = vsub.f32 %v231, %v248
        %v265 = vsub.f32 %v232, %v251
        %v266 = vsub.f32 %v233, %v254
        %v267 = vsub.f32 %v234, %v245
        %v268 = vsub.f32 %v235, %v248
        %v269 = vsub.f32 %v236, %v251
        %v270 = vsub.f32 %v237, %v254
        %v271 = vmul.f32 %v255, 1.442695
        %v272 = vpow.pop %v271
        %v273 = vmul.f32 %v256, 1.442695
        %v274 = vpow.pop %v273
        %v275 = vmul.f32 %v257, 1.442695
        %v276 = vpow.pop %v275
        %v277 = vmul.f32 %v258, 1.442695
        %v278 = vpow.pop %v277
        %v279 = vmul.f32 %v259, 1.442695
        %v280 = vpow.pop %v279
        %v281 = vmul.f32 %v260, 1.442695
        %v282 = vpow.pop %v281
        %v283 = vmul.f32 %v261, 1.442695
        %v284 = vpow.pop %v283
        %v285 = vmul.f32 %v262, 1.442695
        %v286 = vpow.pop %v285
        %v287 = vmul.f32 %v263, 1.442695
        %v288 = vpow.pop %v287
        %v289 = vmul.f32 %v264, 1.442695
        %v290 = vpow.pop %v289
        %v291 = vmul.f32 %v265, 1.442695
        %v292 = vpow.pop %v291
        %v293 = vmul.f32 %v266, 1.442695
        %v294 = vpow.pop %v293
        %v295 = vmul.f32 %v267, 1.442695
        %v296 = vpow.pop %v295
        %v297 = vmul.f32 %v268, 1.442695
        %v298 = vpow.pop %v297
        %v299 = vmul.f32 %v269, 1.442695
        %v300 = vpow.pop %v299
        %v301 = vmul.f32 %v270, 1.442695
        %v302 = vpow.pop %v301
        %v303 = vadd.f32 %v272, %v280
        %v304 = vadd.f32 %v303, %v288
        %v305 = vadd.f32 %v304, %v296
        %v306 = vadd.f32 %v274, %v282
        %v307 = vadd.f32 %v306, %v290
        %v308 = vadd.f32 %v307, %v298
        %v309 = vadd.f32 %v276, %v284
        %v310 = vadd.f32 %v309, %v292
        %v311 = vadd.f32 %v310, %v300
        %v312 = vadd.f32 %v278, %v286
        %v313 = vadd.f32 %v312, %v294
        %v314 = vadd.f32 %v313, %v302
        %vm315 = vcmp.eq.s32.totalorder %v239, 0
        %vm316 = vcmp.eq.s32.totalorder %v240, 0
        %vm317 = vcmp.eq.s32.totalorder %v241, 0
        %vm318 = vcmp.eq.s32.totalorder %v242, 0
        %vm319 = vcmp.eq.s32.totalorder %v239, 1
        %vm320 = vcmp.eq.s32.totalorder %v240, 1
        %vm321 = vcmp.eq.s32.totalorder %v241, 1
        %vm322 = vcmp.eq.s32.totalorder %v242, 1
        %vm323 = vcmp.eq.s32.totalorder %v239, 2
        %vm324 = vcmp.eq.s32.totalorder %v240, 2
        %vm325 = vcmp.eq.s32.totalorder %v241, 2
        %vm326 = vcmp.eq.s32.totalorder %v242, 2
        %vm327 = vcmp.eq.s32.totalorder %v239, 3
        %vm328 = vcmp.eq.s32.totalorder %v240, 3
        %vm329 = vcmp.eq.s32.totalorder %v241, 3
        %vm330 = vcmp.eq.s32.totalorder %v242, 3
        %v331 = vsel %vm315, %v272, 0.0
        %v332 = vsel %vm316, %v274, 0.0
        %v333 = vsel %vm317, %v276, 0.0
        %v334 = vsel %vm318, %v278, 0.0
        %v335 = vsel %vm319, %v280, 0.0
        %v336 = vsel %vm320, %v282, 0.0
        %v337 = vsel %vm321, %v284, 0.0
        %v338 = vsel %vm322, %v286, 0.0
        %v339 = vsel %vm323, %v288, 0.0
        %v340 = vsel %vm324, %v290, 0.0
        %v341 = vsel %vm325, %v292, 0.0
        %v342 = vsel %vm326, %v294, 0.0
        %v343 = vsel %vm327, %v296, 0.0
        %v344 = vsel %vm328, %v298, 0.0
        %v345 = vsel %vm329, %v300, 0.0
        %v346 = vsel %vm330, %v302, 0.0
        %v347 = vadd.f32 %v331, %v335
        %v348 = vadd.f32 %v347, %v339
        %v349 = vadd.f32 %v348, %v343
        %v350 = vadd.f32 %v332, %v336
        %v351 = vadd.f32 %v350, %v340
        %v352 = vadd.f32 %v351, %v344
        %v353 = vadd.f32 %v333, %v337
        %v354 = vadd.f32 %v353, %v341
        %v355 = vadd.f32 %v354, %v345
        %v356 = vadd.f32 %v334, %v338
        %v357 = vadd.f32 %v356, %v342
        %v358 = vadd.f32 %v357, %v346
        %v359 = vrcp.pop %v305
        %v360 = vmul.f32 %v349, %v359
        %v361 = vrcp.pop %v308
        %v362 = vmul.f32 %v352, %v361
        %v363 = vrcp.pop %v311
        %v364 = vmul.f32 %v355, %v363
        %v365 = vrcp.pop %v314
        %v366 = vmul.f32 %v358, %v365
        %v367 = vadd.f32 %v360, 1e-10
        %v368 = vadd.f32 %v362, 1e-10
        %v369 = vadd.f32 %v364, 1e-10
        %v370 = vadd.f32 %v366, 1e-10
        %v371 = vsub.f32 1.0, %v367
        %v372 = vsub.f32 1.0, %v368
        %v373 = vsub.f32 1.0, %v369
        %v374 = vsub.f32 1.0, %v370
        %v375 = vmul.f32 %v371, %v371
        %v376 = vmul.f32 %v372, %v372
        %v377 = vmul.f32 %v373, %v373
        %v378 = vmul.f32 %v374, %v374
        %v379 = vsub.f32 0.0, %v375
        %v380 = vsub.f32 0.0, %v376
        %v381 = vsub.f32 0.0, %v377
        %v382 = vsub.f32 0.0, %v378
        %v383 = vlog2.pop %v367
        %v384 = vmul.f32 %v383, 0.6931472
        %v385 = vlog2.pop %v368
        %v386 = vmul.f32 %v385, 0.6931472
        %v387 = vlog2.pop %v369
        %v388 = vmul.f32 %v387, 0.6931472
        %v389 = vlog2.pop %v370
        %v390 = vmul.f32 %v389, 0.6931472
        %v391 = vmul.f32 %v379, %v384
        %v392 = vmul.f32 %v380, %v386
        %v393 = vmul.f32 %v381, %v388
        %v394 = vmul.f32 %v382, %v390
        %p395 = scmp.ne.s32.totalorder %s27, 0
        // Predicated region
        $region37: #{tpu_custom_call.1} parent=27 // pred_check
          %p396 = pneg %p395
        $region38: #{tpu_custom_call.1} parent=27 // pred_check_branch
          %398 = sbr.rel (%p396) target = $region40
        $region39: #{tpu_custom_call.1} parent=27 // pred_region
          %v399 = vadd.f32 %v391, %v392
          %v400 = vadd.f32 %v399, %v393
          %v401 = vadd.f32 %v400, %v394
          %402 = vst [vmem:[%s219] sm:$0xff] %v401
        $region40: #{tpu_custom_call.1} parent=27 // pred_fallthru
          _
        %p403 = scmp.eq.s32.totalorder %s27, 0
        // Predicated region
        $region41: #{tpu_custom_call.1} parent=27 // pred_check
          %p404 = pneg %p403
        $region42: #{tpu_custom_call.1} parent=27 // pred_check_branch
          %406 = sbr.rel (%p404) target = $region44
        $region43: #{tpu_custom_call.1} parent=27 // pred_region
          %s407 = smul.u32 %s27, 32
          %v408 = vlaneseq
          %v409 = vshrl.u32 %v408, 7
          %v410 = vadd.s32 %v409, 8
          %v411 = vadd.s32 %v409, 16
          %v412 = vadd.s32 %v409, 24
          %v413 = vstv %s407
          %v414 = vadd.s32 %v413, %v409
          %v415 = vadd.s32 %v413, %v410
          %v416 = vadd.s32 %v413, %v411
          %v417 = vadd.s32 %v413, %v412
          %v418 = vlaneseq
          %v419 = vand.u32 %v418, 127
          %vm420 = vcmp.lt.s32.totalorder %v414, 2
          %vm421 = vcmp.lt.s32.totalorder %v415, 2
          %vm422 = vcmp.lt.s32.totalorder %v416, 2
          %vm423 = vcmp.lt.s32.totalorder %v417, 2
          %vm424 = vcmp.eq.s32.totalorder %v414, 2
          %vm425 = vcmp.eq.s32.totalorder %v415, 2
          %vm426 = vcmp.eq.s32.totalorder %v416, 2
          %vm427 = vcmp.eq.s32.totalorder %v417, 2
          %vm428 = vcmp.lt.s32.totalorder %v419, 0
          %vm429 = vmand %vm424, %vm428
          %vm430 = vmand %vm425, %vm428
          %vm431 = vmand %vm426, %vm428
          %vm432 = vmand %vm427, %vm428
          %vm433 = vmor %vm420, %vm429
          %vm434 = vmor %vm421, %vm430
          %vm435 = vmor %vm422, %vm431
          %vm436 = vmor %vm423, %vm432
          %v437 = vsel %vm433, %v391, 0.0
          %v438 = vsel %vm434, %v392, 0.0
          %v439 = vsel %vm435, %v393, 0.0
          %v440 = vsel %vm436, %v394, 0.0
          %v441 = vadd.f32 %v437, %v438
          %v442 = vadd.f32 %v441, %v439
          %v443 = vadd.f32 %v442, %v440
          %444 = vst [vmem:[%s219] sm:$0xff] %v443
        $region44: #{tpu_custom_call.1} parent=27 // pred_fallthru
          _
        %s445 = sand.u32 %s100, 1
        %s446 = scalar_lea.sflag [#allocation4], %s445
        %s447 = sand.u32 %s100, 1
        %s448 = smul.addr %s447, 8
        %s449 = scalar_lea.vmem [#allocation7], %s448
        // Predicated region
        $region45: #{tpu_custom_call.1} parent=27 // pred_check
          %p450 = pneg %p110
        $region46: #{tpu_custom_call.1} parent=27 // pred_check_branch
          %452 = sbr.rel (%p450) target = $region48
        $region47: #{tpu_custom_call.1} parent=27 // pred_region
          %s453 = sadd.s32 %s26, %s27
          %s455 = ssub.s32 128, 128
          %456 = vsyncadd %s446, %s455
          %s457 = smul.addr %s453, 128
          %s458 = scalar_lea.hbm %s2, %s457
          %s460 = sshll.u32 %s449, 4
          %s461 = int_to_ptr.vmem [resolvable:$true] %s460
          %463 = dma.vmem_to_hbm [thread:$0]  %s461, 128, %s458, %s446
        $region48: #{tpu_custom_call.1} parent=27 // pred_fallthru
          _
      $region28: #{tpu_custom_call.1} parent=5 // pred_fallthru
        _
      %p464 = scmp.le.s32.totalorder 2, %s17
      // Predicated region
      $region49: #{tpu_custom_call.1} parent=5 // pred_check
        %p465 = pneg %p464
      $region50: #{tpu_custom_call.1} parent=5 // pred_check_branch
        %467 = sbr.rel (%p465) target = $region52
      $region51: #{tpu_custom_call.1} parent=5 // pred_region
        %s468 = ssub.s32 %s17, 2
        // Predicated region
        $region53: #{tpu_custom_call.1} parent=51 // pred_check
          %p469 = pneg %p116
        $region54: #{tpu_custom_call.1} parent=51 // pred_check_branch
          %471 = sbr.rel (%p469) target = $region56
        $region55: #{tpu_custom_call.1} parent=51 // pred_region
          %s472 = sand.u32 %s101, 1
          %s473 = scalar_lea.sflag [#allocation4], %s472
          %s474 = sand.u32 %s101, 1
          %s475 = smul.addr %s474, 8
          %s476 = scalar_lea.vmem [#allocation7], %s475
          %477 = dma.done %s473, 128
        $region56: #{tpu_custom_call.1} parent=51 // pred_fallthru
          _
      $region52: #{tpu_custom_call.1} parent=5 // pred_fallthru
        _
    $region6: #{tpu_custom_call.1} parent=1 // loop_footer
      %s21 = sadd.s32 1, %s17
    $region7: #{tpu_custom_call.1} parent=1 // loop_footer_branch
      %16 = sbr.rel target = $region3
    $region8: #{tpu_custom_call.1} parent=1 // loop_exit
      _
    %478 = vsyncpa [#allocation3], 1
    %s479 = scalar_lea.sflag [#allocation3], 1
    %480 = vsyncpa %s479, 1
    %481 = vsyncpa [#allocation6], 1
    %s482 = scalar_lea.sflag [#allocation6], 1
    %483 = vsyncpa %s482, 1
    %484 = vsyncpa [#allocation4], 1
    %s485 = scalar_lea.sflag [#allocation4], 1
    %486 = vsyncpa %s485, 1

</llo_original>
